<compile_context>
chip_gen: v7x
topology: tpu7x:2x2x1
jax: 0.10.0
libtpu: 0.0.40
codegen_flags: <defaults>
</compile_context>

<pallas_src>
import jax
import jax.numpy as jnp
from jax.experimental import pallas as pl
from jax.experimental.pallas import tpu as pltpu

EPS = 1e-5
NEG_PAD = -1e30  # padded-logit bias: exp(NEG_PAD - m) == 0, LSE unchanged

D_IN = 768  # fc1 in
H1 = 256    # fc1 out
H2 = 64     # fc2 out (padded to 128 lanes inside the kernel)
H2P = 128
OUT = 2     # real logits
OUTP = 128  # padded lane-dense logits width inside the kernel


def _network_phi_kernel(x_ref, w1_ref, w2_ref, w3_ref, vec_ref, o_ref):
    # x: (B, 768) f32 ; w1: (768, 256) bf16 ; w2: (256, 128) bf16 ;
    # w3: (128, 128) bf16 ; vec: (8, 256) f32 packed bias/gamma/beta slab ;
    # o:  (B, 2) f32.
    #
    # In-kernel f32 -> bf16 cast of the activations (MXU-native operand dtype;
    # avoids a separate wrapper-side XLA cast pass).
    x = x_ref[...].astype(jnp.bfloat16)

    vec = vec_ref[...]
    b1 = vec[0:1, :]            # (1, 256)
    g1 = vec[1:2, :]
    be1 = vec[2:3, :]
    b2 = vec[3:4, :H2P]         # (1, 128)  lanes 64:128 are zero-padding
    g2 = vec[4:5, :H2P]
    be2 = vec[5:6, :H2P]
    b3 = vec[6:7, :OUTP]        # (1, 128)  lanes 2:128 are NEG_PAD

    # ---- fc1: (B, 768) @ (768, 256) + b1  (bf16 MXU, f32 accumulate) ----
    h = jnp.dot(x, w1_ref[...], preferred_element_type=jnp.float32) + b1

    # ---- bn1 (training-mode batch stats, single fused pass) + relu, f32 ----
    m1 = jnp.mean(h, axis=0, keepdims=True)
    v1 = jnp.maximum(jnp.mean(h * h, axis=0, keepdims=True) - m1 * m1, 0.0)
    h = jnp.maximum((h - m1) * jax.lax.rsqrt(v1 + EPS) * g1 + be1, 0.0)

    # ---- fc2: (B, 256) @ (256, 128-padded) + b2 ----
    h = jnp.dot(h.astype(jnp.bfloat16), w2_ref[...],
                preferred_element_type=jnp.float32) + b2

    # ---- bn2 + relu (padded lanes stay exactly 0: zero w2/b2/g2/be2 pad) ----
    m2 = jnp.mean(h, axis=0, keepdims=True)
    v2 = jnp.maximum(jnp.mean(h * h, axis=0, keepdims=True) - m2 * m2, 0.0)
    h = jnp.maximum((h - m2) * jax.lax.rsqrt(v2 + EPS) * g2 + be2, 0.0)

    # ---- fc3: (B, 128) @ (128, 128-padded) + b3  -> lane-dense logits ----
    logits = jnp.dot(h.astype(jnp.bfloat16), w3_ref[...],
                     preferred_element_type=jnp.float32) + b3

    # ---- log_softmax over lanes (padded lanes contribute exp(-1e30)=0) ----
    m = jnp.max(logits, axis=1, keepdims=True)
    z = logits - m
    lse = jnp.log(jnp.sum(jnp.exp(z), axis=1, keepdims=True))
    # Store only the 2 real logit lanes: no wrapper slice pass, ~64x less
    # output writeback than a padded (B, 128) block.
    o_ref[...] = (z - lse)[:, :OUT].astype(o_ref.dtype)


def network_phi_forward(x, kparams):
    """x: (B, 768) float32.  kparams: output of prepare_params().  Returns (B, 2) f32."""
    B = x.shape[0]

    # Advisory cost hint for XLA scheduling around the custom call.
    flops = 2 * B * (D_IN * H1 + H1 * H2P + H2P * OUTP)
    weight_bytes = 2 * (D_IN * H1 + H1 * H2P + H2P * OUTP) + 4 * 8 * H1
    bytes_accessed = 4 * B * D_IN + weight_bytes + 4 * B * OUT
    transcendentals = B * (OUTP + 2) + H1 + H2P  # exp/log + rsqrt

    vmem_spec = pl.BlockSpec(memory_space=pltpu.MemorySpace.VMEM)

    out = pl.pallas_call(
        _network_phi_kernel,
        out_shape=jax.ShapeDtypeStruct((B, OUT), jnp.float32),
        in_specs=[vmem_spec] * 5,
        out_specs=vmem_spec,
        compiler_params=pltpu.CompilerParams(
            # Explicit scoped-VMEM limit is load-bearing on v5e (16 MiB default);
            # 32 MiB is safely under v7x's 64 MiB physical VMEM as well.
            vmem_limit_bytes=32 * 1024 * 1024),
        cost_estimate=pl.CostEstimate(
            flops=flops, transcendentals=transcendentals,
            bytes_accessed=bytes_accessed),
    )(x, kparams["w1"], kparams["w2"], kparams["w3"], kparams["vec"])

    return out


def init_params(key):
    """f32 master parameters; shapes/init match NetworkPhi.__init__ (PyTorch)."""
    keys = jax.random.split(key, 6)

    def linear(kw, kb, fan_in, fan_out):
        bound = 1.0 / (fan_in ** 0.5)
        w = jax.random.uniform(kw, (fan_in, fan_out), jnp.float32, -bound, bound)
        b = jax.random.uniform(kb, (1, fan_out), jnp.float32, -bound, bound)
        return w, b

    w1, b1 = linear(keys[0], keys[1], D_IN, H1)
    w2, b2 = linear(keys[2], keys[3], H1, H2)
    w3, b3 = linear(keys[4], keys[5], H2, OUT)

    return dict(
        w1=w1, b1=b1,
        g1=jnp.ones((1, H1), jnp.float32), be1=jnp.zeros((1, H1), jnp.float32),
        w2=w2, b2=b2,
        g2=jnp.ones((1, H2), jnp.float32), be2=jnp.zeros((1, H2), jnp.float32),
        w3=w3, b3=b3,
    )


def prepare_params(params):
    """One-time host-side prep: pad to lane-dense shapes, pack the small
    vectors into one (8, 256) slab, cast matmul weights to bf16."""
    f32 = jnp.float32

    # pad fc2 out-dim 64 -> 128 (zero columns; BN/ReLU keep them exactly 0)
    w2p = jnp.zeros((H1, H2P), f32).at[:, :H2].set(params["w2"])
    # pad fc3: input 64 -> 128 rows (zero), output 2 -> 128 cols (zero)
    w3p = jnp.zeros((H2P, OUTP), f32).at[:H2, :OUT].set(params["w3"])

    vec = jnp.zeros((8, H1), f32)
    vec = vec.at[0, :].set(params["b1"][0])
    vec = vec.at[1, :].set(params["g1"][0])
    vec = vec.at[2, :].set(params["be1"][0])
    vec = vec.at[3, :H2].set(params["b2"][0])
    vec = vec.at[4, :H2].set(params["g2"][0])      # padded gamma lanes = 0
    vec = vec.at[5, :H2].set(params["be2"][0])     # padded beta  lanes = 0
    b3_row = jnp.full((OUTP,), NEG_PAD, f32).at[:OUT].set(params["b3"][0])
    vec = vec.at[6, :OUTP].set(b3_row)

    return dict(
        w1=params["w1"].astype(jnp.bfloat16),
        w2=w2p.astype(jnp.bfloat16),
        w3=w3p.astype(jnp.bfloat16),
        vec=vec,
    )


def network_phi_reference(x, params):
    """Pure-JAX f32 reference matching the PyTorch forward (training-mode BN)."""
    h = x @ params["w1"] + params["b1"]
    m = jnp.mean(h, axis=0, keepdims=True)
    v = jnp.mean((h - m) ** 2, axis=0, keepdims=True)
    h = jnp.maximum((h - m) * jax.lax.rsqrt(v + EPS) * params["g1"] + params["be1"], 0.0)
    h = h @ params["w2"] + params["b2"]
    m = jnp.mean(h, axis=0, keepdims=True)
    v = jnp.mean((h - m) ** 2, axis=0, keepdims=True)
    h = jnp.maximum((h - m) * jax.lax.rsqrt(v + EPS) * params["g2"] + params["be2"], 0.0)
    logits = h @ params["w3"] + params["b3"]
    return jax.nn.log_softmax(logits, axis=1)


if __name__ == "__main__":
    key = jax.random.PRNGKey(0)
    k_x, k_p = jax.random.split(key)

    B = 16  # >1: training-mode BN with B=1 is degenerate (var=0), as in PyTorch
    x = jax.random.normal(k_x, (B, D_IN), jnp.float32)
    params = init_params(k_p)
    kparams = prepare_params(params)

    out = network_phi_forward(x, kparams)
    out = jax.block_until_ready(out)

    assert out.shape == (B, OUT), out.shape

    # log-softmax rows should exponentiate-and-sum to 1
    row_sums = jnp.sum(jnp.exp(out), axis=1)
    assert bool(jnp.all(jnp.abs(row_sums - 1.0) < 1e-3)), row_sums

    # match the f32 reference (loose tolerance: matmul operands are bf16)
    ref = network_phi_reference(x, params)
    max_err = float(jnp.max(jnp.abs(out - ref)))
    assert max_err < 0.3, max_err

    print("KERNEL_OK")
</pallas_src>

<mosaic_0001>
module attributes {stable_mosaic.version = 11 : i64} {
  func.func @_network_phi_kernel(%arg0: memref<16x768xf32, #tpu.memory_space<vmem>>, %arg1: memref<768x256xbf16, #tpu.memory_space<vmem>>, %arg2: memref<256x128xbf16, #tpu.memory_space<vmem>>, %arg3: memref<128x128xbf16, #tpu.memory_space<vmem>>, %arg4: memref<8x256xf32, #tpu.memory_space<vmem>>, %arg5: memref<16x2xf32, #tpu.memory_space<vmem>>) attributes {dimension_semantics = [], scalar_prefetch = 0 : i64, scratch_operands = 0 : i64, tpu.core_type = #tpu.core_type<tc>} {
    %c0 = arith.constant 0 : index
    %c0_0 = arith.constant 0 : index
    %0 = vector.load %arg0[%c0, %c0_0] : memref<16x768xf32, #tpu.memory_space<vmem>>, vector<16x768xf32>
    %1 = arith.truncf %0 : vector<16x768xf32> to vector<16x768xbf16>
    %c0_1 = arith.constant 0 : index
    %c0_2 = arith.constant 0 : index
    %2 = vector.load %arg4[%c0_1, %c0_2] : memref<8x256xf32, #tpu.memory_space<vmem>>, vector<8x256xf32>
    %3 = vector.extract_strided_slice %2 {offsets = [0, 0], sizes = [1, 256], strides = [1, 1]} : vector<8x256xf32> to vector<1x256xf32>
    %4 = vector.extract_strided_slice %2 {offsets = [1, 0], sizes = [1, 256], strides = [1, 1]} : vector<8x256xf32> to vector<1x256xf32>
    %5 = vector.extract_strided_slice %2 {offsets = [2, 0], sizes = [1, 256], strides = [1, 1]} : vector<8x256xf32> to vector<1x256xf32>
    %6 = vector.extract_strided_slice %2 {offsets = [3, 0], sizes = [1, 128], strides = [1, 1]} : vector<8x256xf32> to vector<1x128xf32>
    %7 = vector.extract_strided_slice %2 {offsets = [4, 0], sizes = [1, 128], strides = [1, 1]} : vector<8x256xf32> to vector<1x128xf32>
    %8 = vector.extract_strided_slice %2 {offsets = [5, 0], sizes = [1, 128], strides = [1, 1]} : vector<8x256xf32> to vector<1x128xf32>
    %9 = vector.extract_strided_slice %2 {offsets = [6, 0], sizes = [1, 128], strides = [1, 1]} : vector<8x256xf32> to vector<1x128xf32>
    %c0_3 = arith.constant 0 : index
    %c0_4 = arith.constant 0 : index
    %10 = vector.load %arg1[%c0_3, %c0_4] : memref<768x256xbf16, #tpu.memory_space<vmem>>, vector<768x256xbf16>
    %cst = arith.constant dense<0.000000e+00> : vector<16x256xf32>
    %11 = tpu.matmul %1, %10, %cst {dimension_numbers = #tpu.dot_dimension_numbers<[1], [0], [0], [1], [0, 0, 1, 1], [], []>} : vector<16x768xbf16>, vector<768x256xbf16>, vector<16x256xf32> -> vector<16x256xf32>
    %12 = vector.broadcast %3 : vector<1x256xf32> to vector<16x256xf32>
    %13 = arith.addf %11, %12 : vector<16x256xf32>
    %cst_5 = arith.constant dense<0.000000e+00> : vector<256xf32>
    %14 = vector.multi_reduction <add>, %13, %cst_5 [0] : vector<16x256xf32> to vector<256xf32>
    %15 = vector.shape_cast %14 : vector<256xf32> to vector<1x256xf32>
    %cst_6 = arith.constant 1.600000e+01 : f32
    %16 = vector.broadcast %cst_6 : f32 to vector<1x256xf32>
    %17 = arith.divf %15, %16 : vector<1x256xf32>
    %18 = arith.mulf %13, %13 : vector<16x256xf32>
    %cst_7 = arith.constant dense<0.000000e+00> : vector<256xf32>
    %19 = vector.multi_reduction <add>, %18, %cst_7 [0] : vector<16x256xf32> to vector<256xf32>
    %20 = vector.shape_cast %19 : vector<256xf32> to vector<1x256xf32>
    %cst_8 = arith.constant 1.600000e+01 : f32
    %21 = vector.broadcast %cst_8 : f32 to vector<1x256xf32>
    %22 = arith.divf %20, %21 : vector<1x256xf32>
    %23 = arith.mulf %17, %17 : vector<1x256xf32>
    %24 = arith.subf %22, %23 : vector<1x256xf32>
    %cst_9 = arith.constant 0.000000e+00 : f32
    %25 = vector.broadcast %cst_9 : f32 to vector<1x256xf32>
    %26 = arith.maximumf %24, %25 : vector<1x256xf32>
    %27 = vector.broadcast %17 : vector<1x256xf32> to vector<16x256xf32>
    %28 = arith.subf %13, %27 : vector<16x256xf32>
    %cst_10 = arith.constant 9.99999974E-6 : f32
    %29 = vector.broadcast %cst_10 : f32 to vector<1x256xf32>
    %30 = arith.addf %26, %29 : vector<1x256xf32>
    %31 = math.rsqrt %30 : vector<1x256xf32>
    %32 = vector.broadcast %31 : vector<1x256xf32> to vector<16x256xf32>
    %33 = arith.mulf %28, %32 : vector<16x256xf32>
    %34 = vector.broadcast %4 : vector<1x256xf32> to vector<16x256xf32>
    %35 = arith.mulf %33, %34 : vector<16x256xf32>
    %36 = vector.broadcast %5 : vector<1x256xf32> to vector<16x256xf32>
    %37 = arith.addf %35, %36 : vector<16x256xf32>
    %cst_11 = arith.constant 0.000000e+00 : f32
    %38 = vector.broadcast %cst_11 : f32 to vector<16x256xf32>
    %39 = arith.maximumf %37, %38 : vector<16x256xf32>
    %40 = arith.truncf %39 : vector<16x256xf32> to vector<16x256xbf16>
    %c0_12 = arith.constant 0 : index
    %c0_13 = arith.constant 0 : index
    %41 = vector.load %arg2[%c0_12, %c0_13] : memref<256x128xbf16, #tpu.memory_space<vmem>>, vector<256x128xbf16>
    %cst_14 = arith.constant dense<0.000000e+00> : vector<16x128xf32>
    %42 = tpu.matmul %40, %41, %cst_14 {dimension_numbers = #tpu.dot_dimension_numbers<[1], [0], [0], [1], [0, 0, 1, 1], [], []>} : vector<16x256xbf16>, vector<256x128xbf16>, vector<16x128xf32> -> vector<16x128xf32>
    %43 = vector.broadcast %6 : vector<1x128xf32> to vector<16x128xf32>
    %44 = arith.addf %42, %43 : vector<16x128xf32>
    %cst_15 = arith.constant dense<0.000000e+00> : vector<128xf32>
    %45 = vector.multi_reduction <add>, %44, %cst_15 [0] : vector<16x128xf32> to vector<128xf32>
    %46 = vector.shape_cast %45 : vector<128xf32> to vector<1x128xf32>
    %cst_16 = arith.constant 1.600000e+01 : f32
    %47 = vector.broadcast %cst_16 : f32 to vector<1x128xf32>
    %48 = arith.divf %46, %47 : vector<1x128xf32>
    %49 = arith.mulf %44, %44 : vector<16x128xf32>
    %cst_17 = arith.constant dense<0.000000e+00> : vector<128xf32>
    %50 = vector.multi_reduction <add>, %49, %cst_17 [0] : vector<16x128xf32> to vector<128xf32>
    %51 = vector.shape_cast %50 : vector<128xf32> to vector<1x128xf32>
    %cst_18 = arith.constant 1.600000e+01 : f32
    %52 = vector.broadcast %cst_18 : f32 to vector<1x128xf32>
    %53 = arith.divf %51, %52 : vector<1x128xf32>
    %54 = arith.mulf %48, %48 : vector<1x128xf32>
    %55 = arith.subf %53, %54 : vector<1x128xf32>
    %cst_19 = arith.constant 0.000000e+00 : f32
    %56 = vector.broadcast %cst_19 : f32 to vector<1x128xf32>
    %57 = arith.maximumf %55, %56 : vector<1x128xf32>
    %58 = vector.broadcast %48 : vector<1x128xf32> to vector<16x128xf32>
    %59 = arith.subf %44, %58 : vector<16x128xf32>
    %cst_20 = arith.constant 9.99999974E-6 : f32
    %60 = vector.broadcast %cst_20 : f32 to vector<1x128xf32>
    %61 = arith.addf %57, %60 : vector<1x128xf32>
    %62 = math.rsqrt %61 : vector<1x128xf32>
    %63 = vector.broadcast %62 : vector<1x128xf32> to vector<16x128xf32>
    %64 = arith.mulf %59, %63 : vector<16x128xf32>
    %65 = vector.broadcast %7 : vector<1x128xf32> to vector<16x128xf32>
    %66 = arith.mulf %64, %65 : vector<16x128xf32>
    %67 = vector.broadcast %8 : vector<1x128xf32> to vector<16x128xf32>
    %68 = arith.addf %66, %67 : vector<16x128xf32>
    %cst_21 = arith.constant 0.000000e+00 : f32
    %69 = vector.broadcast %cst_21 : f32 to vector<16x128xf32>
    %70 = arith.maximumf %68, %69 : vector<16x128xf32>
    %71 = arith.truncf %70 : vector<16x128xf32> to vector<16x128xbf16>
    %c0_22 = arith.constant 0 : index
    %c0_23 = arith.constant 0 : index
    %72 = vector.load %arg3[%c0_22, %c0_23] : memref<128x128xbf16, #tpu.memory_space<vmem>>, vector<128x128xbf16>
    %cst_24 = arith.constant dense<0.000000e+00> : vector<16x128xf32>
    %73 = tpu.matmul %71, %72, %cst_24 {dimension_numbers = #tpu.dot_dimension_numbers<[1], [0], [0], [1], [0, 0, 1, 1], [], []>} : vector<16x128xbf16>, vector<128x128xbf16>, vector<16x128xf32> -> vector<16x128xf32>
    %74 = vector.broadcast %9 : vector<1x128xf32> to vector<16x128xf32>
    %75 = arith.addf %73, %74 : vector<16x128xf32>
    %cst_25 = arith.constant dense<0xFF800000> : vector<16xf32>
    %76 = vector.multi_reduction <maximumf>, %75, %cst_25 [1] : vector<16x128xf32> to vector<16xf32>
    %77 = vector.shape_cast %76 : vector<16xf32> to vector<16x1xf32>
    %78 = vector.broadcast %77 : vector<16x1xf32> to vector<16x128xf32>
    %79 = arith.subf %75, %78 : vector<16x128xf32>
    %80 = math.exp %79 : vector<16x128xf32>
    %cst_26 = arith.constant dense<0.000000e+00> : vector<16xf32>
    %81 = vector.multi_reduction <add>, %80, %cst_26 [1] : vector<16x128xf32> to vector<16xf32>
    %82 = vector.shape_cast %81 : vector<16xf32> to vector<16x1xf32>
    %83 = math.log %82 : vector<16x1xf32>
    %84 = vector.broadcast %83 : vector<16x1xf32> to vector<16x128xf32>
    %85 = arith.subf %79, %84 : vector<16x128xf32>
    %86 = vector.extract_strided_slice %85 {offsets = [0, 0], sizes = [16, 2], strides = [1, 1]} : vector<16x128xf32> to vector<16x2xf32>
    %c0_27 = arith.constant 0 : index
    %c0_28 = arith.constant 0 : index
    %87 = vector.load %arg5[%c0_27, %c0_28] : memref<16x2xf32, #tpu.memory_space<vmem>>, vector<16x2xf32>
    tpu.vector_store %arg5[%c0_27, %c0_28], %86 {strides = array<i32>} : memref<16x2xf32, #tpu.memory_space<vmem>>, vector<16x2xf32>,
    return
  }
}

</mosaic_0001>

<llo_original>
// kernel: tpu_custom_call.1
$region0: #{tpu_custom_call.1}
  #allocation0 [shape = 'u32[]', space=smem, size = 0x4, offset = 0x4, fixed_abs, tag = 'smem constant byte address 0x4 - core index']
  #allocation1 [shape = 'u32[144,128]{1,0:T(1,128)}', space=vmem, size = 0x12000, scoped, tag = 'internal scratch']
  %s0 = inlined_call_operand.hbm [shape: f32[16,768], index: 0, kind: input, shape index: {}]
  %s1 = inlined_call_operand.hbm [shape: bf16[768,256], index: 1, kind: input, shape index: {}]
  %s2 = inlined_call_operand.hbm [shape: bf16[256,128], index: 2, kind: input, shape index: {}]
  %s3 = inlined_call_operand.hbm [shape: bf16[128,128], index: 3, kind: input, shape index: {}]
  %s4 = inlined_call_operand.hbm [shape: f32[8,256], index: 4, kind: input, shape index: {}]
  %s5 = inlined_call_operand.vmem [shape: f32[16,2], index: 5, kind: output, shape index: {}]
  %s6 = sld [smem:[#allocation0]]
  $region50: #{tpu_custom_call.1} parent=0
    _
  %s8 = ssub.s32 1, %s6
  %s9 = scalar_select 0, %s8, %s6
  $region1: #{tpu_custom_call.1} parent=0
    #allocation2 [shape = 'u8[49152]{0}', space=vmem, size = 0xc000, scoped, tag = 'input window, operand 0, single buffered']
    #allocation3 [shape = 's32[1]{0}', space=sflag, size = 0x4, scoped, tag = 'scoped memory for tpu_custom_call.1']
    #allocation4 [shape = 'u8[393216]{0}', space=vmem, size = 0x60000, scoped, tag = 'input window, operand 1, single buffered']
    #allocation5 [shape = 's32[1]{0}', space=sflag, size = 0x4, scoped, tag = 'scoped memory for tpu_custom_call.1']
    #allocation6 [shape = 'u8[65536]{0}', space=vmem, size = 0x10000, scoped, tag = 'input window, operand 2, single buffered']
    #allocation7 [shape = 'u8[32768]{0}', space=vmem, size = 0x8000, scoped, tag = 'input window, operand 3, single buffered']
    #allocation8 [shape = 's32[1]{0}', space=sflag, size = 0x4, scoped, tag = 'scoped memory for tpu_custom_call.1']
    #allocation9 [shape = 'u8[8192]{0}', space=vmem, size = 0x2000, scoped, tag = 'input window, operand 4, single buffered']
    %10 = vsyncpa [#allocation3], 0
    %11 = vsyncpa [#allocation5], 0
    %12 = vsyncpa [#allocation8], 0
    // Predicated region
    $region2: #{tpu_custom_call.1} parent=1 // pred_check
      _
    $region3: #{tpu_custom_call.1} parent=1 // pred_check_branch
      %14 = sbr.rel (0) target = $region5
    $region4: #{tpu_custom_call.1} parent=1 // pred_region
      %s16 = ssub.s32 1536, 1536
      %17 = vsyncadd [#allocation3], %s16
      %s18 = sshll.u32 [#allocation2], 4
      %s19 = int_to_ptr.vmem [resolvable:$true] %s18
      %24 = dma.hbm_to_vmem [thread:$0]  %s0, 1536, %s19, [#allocation3], 768, 768, 48
    $region5: #{tpu_custom_call.1} parent=1 // pred_fallthru
      _
    // Predicated region
    $region6: #{tpu_custom_call.1} parent=1 // pred_check
      _
    $region7: #{tpu_custom_call.1} parent=1 // pred_check_branch
      %26 = sbr.rel (0) target = $region9
    $region8: #{tpu_custom_call.1} parent=1 // pred_region
      %s28 = ssub.s32 12288, 12288
      %29 = vsyncadd [#allocation5], %s28
      %s30 = sshll.u32 [#allocation4], 4
      %s31 = int_to_ptr.vmem [resolvable:$true] %s30
      %36 = dma.hbm_to_vmem [thread:$0]  %s1, 12288, %s31, [#allocation5], 128, 128, 8
    $region9: #{tpu_custom_call.1} parent=1 // pred_fallthru
      _
    // Predicated region
    $region10: #{tpu_custom_call.1} parent=1 // pred_check
      _
    $region11: #{tpu_custom_call.1} parent=1 // pred_check_branch
      %38 = sbr.rel (0) target = $region13
    $region12: #{tpu_custom_call.1} parent=1 // pred_region
      %s40 = ssub.s32 2048, 2048
      %41 = vsyncadd [#allocation5], %s40
      %s42 = sshll.u32 [#allocation6], 4
      %s43 = int_to_ptr.vmem [resolvable:$true] %s42
      %48 = dma.hbm_to_vmem [thread:$0]  %s2, 2048, %s43, [#allocation5], 64, 64, 4
    $region13: #{tpu_custom_call.1} parent=1 // pred_fallthru
      _
    // Predicated region
    $region14: #{tpu_custom_call.1} parent=1 // pred_check
      _
    $region15: #{tpu_custom_call.1} parent=1 // pred_check_branch
      %50 = sbr.rel (0) target = $region17
    $region16: #{tpu_custom_call.1} parent=1 // pred_region
      %s52 = ssub.s32 1024, 1024
      %53 = vsyncadd [#allocation8], %s52
      %s54 = sshll.u32 [#allocation7], 4
      %s55 = int_to_ptr.vmem [resolvable:$true] %s54
      %60 = dma.hbm_to_vmem [thread:$0]  %s3, 1024, %s55, [#allocation8], 64, 64, 4
    $region17: #{tpu_custom_call.1} parent=1 // pred_fallthru
      _
    // Predicated region
    $region18: #{tpu_custom_call.1} parent=1 // pred_check
      _
    $region19: #{tpu_custom_call.1} parent=1 // pred_check_branch
      %62 = sbr.rel (0) target = $region21
    $region20: #{tpu_custom_call.1} parent=1 // pred_region
      %s64 = ssub.s32 256, 256
      %65 = vsyncadd [#allocation8], %s64
      %s67 = sshll.u32 [#allocation9], 4
      %s68 = int_to_ptr.vmem [resolvable:$true] %s67
      %70 = dma.hbm_to_vmem [thread:$0]  %s4, 256, %s68, [#allocation8]
    $region21: #{tpu_custom_call.1} parent=1 // pred_fallthru
      _
    // Predicated region
    $region22: #{tpu_custom_call.1} parent=1 // pred_check
      _
    $region23: #{tpu_custom_call.1} parent=1 // pred_check_branch
      %72 = sbr.rel (0) target = $region25
    $region24: #{tpu_custom_call.1} parent=1 // pred_region
      %73 = dma.done [#allocation3], 1536
    $region25: #{tpu_custom_call.1} parent=1 // pred_fallthru
      _
    // Predicated region
    $region26: #{tpu_custom_call.1} parent=1 // pred_check
      _
    $region27: #{tpu_custom_call.1} parent=1 // pred_check_branch
      %75 = sbr.rel (0) target = $region29
    $region28: #{tpu_custom_call.1} parent=1 // pred_region
      %76 = dma.done [#allocation5], 12288
    $region29: #{tpu_custom_call.1} parent=1 // pred_fallthru
      _
    // Predicated region
    $region30: #{tpu_custom_call.1} parent=1 // pred_check
      _
    $region31: #{tpu_custom_call.1} parent=1 // pred_check_branch
      %78 = sbr.rel (0) target = $region33
    $region32: #{tpu_custom_call.1} parent=1 // pred_region
      %79 = dma.done [#allocation5], 2048
    $region33: #{tpu_custom_call.1} parent=1 // pred_fallthru
      _
    // Predicated region
    $region34: #{tpu_custom_call.1} parent=1 // pred_check
      _
    $region35: #{tpu_custom_call.1} parent=1 // pred_check_branch
      %81 = sbr.rel (0) target = $region37
    $region36: #{tpu_custom_call.1} parent=1 // pred_region
      %82 = dma.done [#allocation8], 1024
    $region37: #{tpu_custom_call.1} parent=1 // pred_fallthru
      _
    // Predicated region
    $region38: #{tpu_custom_call.1} parent=1 // pred_check
      _
    $region39: #{tpu_custom_call.1} parent=1 // pred_check_branch
      %84 = sbr.rel (0) target = $region41
    $region40: #{tpu_custom_call.1} parent=1 // pred_region
      %85 = dma.done [#allocation8], 256
    $region41: #{tpu_custom_call.1} parent=1 // pred_fallthru
      _
    %v87 = vld [vmem:[#allocation2] sm:$0xff]
    %v88 = vld [vmem:[#allocation2 + $0x8] sm:$0xff]
    %v89 = vld [vmem:[#allocation2 + $0x10] sm:$0xff]
    %v90 = vld [vmem:[#allocation2 + $0x18] sm:$0xff]
    %v91 = vld [vmem:[#allocation2 + $0x20] sm:$0xff]
    %v92 = vld [vmem:[#allocation2 + $0x28] sm:$0xff]
    %v93 = vld [vmem:[#allocation2 + $0x30] sm:$0xff]
    %v94 = vld [vmem:[#allocation2 + $0x38] sm:$0xff]
    %v95 = vld [vmem:[#allocation2 + $0x40] sm:$0xff]
    %v96 = vld [vmem:[#allocation2 + $0x48] sm:$0xff]
    %v97 = vld [vmem:[#allocation2 + $0x50] sm:$0xff]
    %v98 = vld [vmem:[#allocation2 + $0x58] sm:$0xff]
    %v99 = vpack.c.bf16 %v93, %v87
    %v100 = vpack.c.bf16 %v94, %v88
    %v101 = vpack.c.bf16 %v95, %v89
    %v102 = vpack.c.bf16 %v96, %v90
    %v103 = vpack.c.bf16 %v97, %v91
    %v104 = vpack.c.bf16 %v98, %v92
    %v105 = vld [vmem:[#allocation9] sm:$0xff]
    %v106 = vld [vmem:[#allocation9 + $0x8] sm:$0xff]
    %v107 = vld [vmem:[#allocation4] sm:$0xff]
    %v108 = vld [vmem:[#allocation4 + $0x8] sm:$0xff]
    %v109 = vld [vmem:[#allocation4 + $0x10] sm:$0xff]
    %v110 = vld [vmem:[#allocation4 + $0x18] sm:$0xff]
    %v111 = vld [vmem:[#allocation4 + $0x20] sm:$0xff]
    %v112 = vld [vmem:[#allocation4 + $0x28] sm:$0xff]
    %v113 = vld [vmem:[#allocation4 + $0x30] sm:$0xff]
    %v114 = vld [vmem:[#allocation4 + $0x38] sm:$0xff]
    %v115 = vld [vmem:[#allocation4 + $0x40] sm:$0xff]
    %v116 = vld [vmem:[#allocation4 + $0x48] sm:$0xff]
    %v117 = vld [vmem:[#allocation4 + $0x50] sm:$0xff]
    %v118 = vld [vmem:[#allocation4 + $0x58] sm:$0xff]
    %v119 = vld [vmem:[#allocation4 + $0x60] sm:$0xff]
    %v120 = vld [vmem:[#allocation4 + $0x68] sm:$0xff]
    %v121 = vld [vmem:[#allocation4 + $0x70] sm:$0xff]
    %v122 = vld [vmem:[#allocation4 + $0x78] sm:$0xff]
    %v123 = vld [vmem:[#allocation4 + $0x80] sm:$0xff]
    %v124 = vld [vmem:[#allocation4 + $0x88] sm:$0xff]
    %v125 = vld [vmem:[#allocation4 + $0x90] sm:$0xff]
    %v126 = vld [vmem:[#allocation4 + $0x98] sm:$0xff]
    %v127 = vld [vmem:[#allocation4 + $0xa0] sm:$0xff]
    %v128 = vld [vmem:[#allocation4 + $0xa8] sm:$0xff]
    %v129 = vld [vmem:[#allocation4 + $0xb0] sm:$0xff]
    %v130 = vld [vmem:[#allocation4 + $0xb8] sm:$0xff]
    %v131 = vld [vmem:[#allocation4 + $0xc0] sm:$0xff]
    %v132 = vld [vmem:[#allocation4 + $0xc8] sm:$0xff]
    %v133 = vld [vmem:[#allocation4 + $0xd0] sm:$0xff]
    %v134 = vld [vmem:[#allocation4 + $0xd8] sm:$0xff]
    %v135 = vld [vmem:[#allocation4 + $0xe0] sm:$0xff]
    %v136 = vld [vmem:[#allocation4 + $0xe8] sm:$0xff]
    %v137 = vld [vmem:[#allocation4 + $0xf0] sm:$0xff]
    %v138 = vld [vmem:[#allocation4 + $0xf8] sm:$0xff]
    %v139 = vld [vmem:[#allocation4 + $0x100] sm:$0xff]
    %v140 = vld [vmem:[#allocation4 + $0x108] sm:$0xff]
    %v141 = vld [vmem:[#allocation4 + $0x110] sm:$0xff]
    %v142 = vld [vmem:[#allocation4 + $0x118] sm:$0xff]
    %v143 = vld [vmem:[#allocation4 + $0x120] sm:$0xff]
    %v144 = vld [vmem:[#allocation4 + $0x128] sm:$0xff]
    %v145 = vld [vmem:[#allocation4 + $0x130] sm:$0xff]
    %v146 = vld [vmem:[#allocation4 + $0x138] sm:$0xff]
    %v147 = vld [vmem:[#allocation4 + $0x140] sm:$0xff]
    %v148 = vld [vmem:[#allocation4 + $0x148] sm:$0xff]
    %v149 = vld [vmem:[#allocation4 + $0x150] sm:$0xff]
    %v150 = vld [vmem:[#allocation4 + $0x158] sm:$0xff]
    %v151 = vld [vmem:[#allocation4 + $0x160] sm:$0xff]
    %v152 = vld [vmem:[#allocation4 + $0x168] sm:$0xff]
    %v153 = vld [vmem:[#allocation4 + $0x170] sm:$0xff]
    %v154 = vld [vmem:[#allocation4 + $0x178] sm:$0xff]
    %v155 = vld [vmem:[#allocation4 + $0x180] sm:$0xff]
    %v156 = vld [vmem:[#allocation4 + $0x188] sm:$0xff]
    %v157 = vld [vmem:[#allocation4 + $0x190] sm:$0xff]
    %v158 = vld [vmem:[#allocation4 + $0x198] sm:$0xff]
    %v159 = vld [vmem:[#allocation4 + $0x1a0] sm:$0xff]
    %v160 = vld [vmem:[#allocation4 + $0x1a8] sm:$0xff]
    %v161 = vld [vmem:[#allocation4 + $0x1b0] sm:$0xff]
    %v162 = vld [vmem:[#allocation4 + $0x1b8] sm:$0xff]
    %v163 = vld [vmem:[#allocation4 + $0x1c0] sm:$0xff]
    %v164 = vld [vmem:[#allocation4 + $0x1c8] sm:$0xff]
    %v165 = vld [vmem:[#allocation4 + $0x1d0] sm:$0xff]
    %v166 = vld [vmem:[#allocation4 + $0x1d8] sm:$0xff]
    %v167 = vld [vmem:[#allocation4 + $0x1e0] sm:$0xff]
    %v168 = vld [vmem:[#allocation4 + $0x1e8] sm:$0xff]
    %v169 = vld [vmem:[#allocation4 + $0x1f0] sm:$0xff]
    %v170 = vld [vmem:[#allocation4 + $0x1f8] sm:$0xff]
    %v171 = vld [vmem:[#allocation4 + $0x200] sm:$0xff]
    %v172 = vld [vmem:[#allocation4 + $0x208] sm:$0xff]
    %v173 = vld [vmem:[#allocation4 + $0x210] sm:$0xff]
    %v174 = vld [vmem:[#allocation4 + $0x218] sm:$0xff]
    %v175 = vld [vmem:[#allocation4 + $0x220] sm:$0xff]
    %v176 = vld [vmem:[#allocation4 + $0x228] sm:$0xff]
    %v177 = vld [vmem:[#allocation4 + $0x230] sm:$0xff]
    %v178 = vld [vmem:[#allocation4 + $0x238] sm:$0xff]
    %v179 = vld [vmem:[#allocation4 + $0x240] sm:$0xff]
    %v180 = vld [vmem:[#allocation4 + $0x248] sm:$0xff]
    %v181 = vld [vmem:[#allocation4 + $0x250] sm:$0xff]
    %v182 = vld [vmem:[#allocation4 + $0x258] sm:$0xff]
    %v183 = vld [vmem:[#allocation4 + $0x260] sm:$0xff]
    %v184 = vld [vmem:[#allocation4 + $0x268] sm:$0xff]
    %v185 = vld [vmem:[#allocation4 + $0x270] sm:$0xff]
    %v186 = vld [vmem:[#allocation4 + $0x278] sm:$0xff]
    %v187 = vld [vmem:[#allocation4 + $0x280] sm:$0xff]
    %v188 = vld [vmem:[#allocation4 + $0x288] sm:$0xff]
    %v189 = vld [vmem:[#allocation4 + $0x290] sm:$0xff]
    %v190 = vld [vmem:[#allocation4 + $0x298] sm:$0xff]
    %v191 = vld [vmem:[#allocation4 + $0x2a0] sm:$0xff]
    %v192 = vld [vmem:[#allocation4 + $0x2a8] sm:$0xff]
    %v193 = vld [vmem:[#allocation4 + $0x2b0] sm:$0xff]
    %v194 = vld [vmem:[#allocation4 + $0x2b8] sm:$0xff]
    %v195 = vld [vmem:[#allocation4 + $0x2c0] sm:$0xff]
    %v196 = vld [vmem:[#allocation4 + $0x2c8] sm:$0xff]
    %v197 = vld [vmem:[#allocation4 + $0x2d0] sm:$0xff]
    %v198 = vld [vmem:[#allocation4 + $0x2d8] sm:$0xff]
    %v199 = vld [vmem:[#allocation4 + $0x2e0] sm:$0xff]
    %v200 = vld [vmem:[#allocation4 + $0x2e8] sm:$0xff]
    %v201 = vld [vmem:[#allocation4 + $0x2f0] sm:$0xff]
    %v202 = vld [vmem:[#allocation4 + $0x2f8] sm:$0xff]
    %v203 = vlaneseq
    %v204 = vshrl.u32 %v203, 7
    %v205 = vsub.s32 0, %v204
    %v206 = vrot.slane %v105, %v205
    %v207 = vlaneseq
    %v208 = vshrl.u32 %v207, 7
    %v209 = vsub.s32 0, %v208
    %v210 = vrot.slane %v106, %v209
    %v307 = vunpack.c.l.b16 %v107
    %v308 = vunpack.c.h.b16 %v107
    %v309 = vunpack.c.l.b16 %v108
    %v310 = vunpack.c.h.b16 %v108
    %v311 = vunpack.c.l.b16 %v109
    %v312 = vunpack.c.h.b16 %v109
    %v313 = vunpack.c.l.b16 %v110
    %v314 = vunpack.c.h.b16 %v110
    %v315 = vunpack.c.l.b16 %v111
    %v316 = vunpack.c.h.b16 %v111
    %v317 = vunpack.c.l.b16 %v112
    %v318 = vunpack.c.h.b16 %v112
    %v319 = vunpack.c.l.b16 %v113
    %v320 = vunpack.c.h.b16 %v113
    %v321 = vunpack.c.l.b16 %v114
    %v322 = vunpack.c.h.b16 %v114
    %v323 = vunpack.c.l.b16 %v115
    %v324 = vunpack.c.h.b16 %v115
    %v325 = vunpack.c.l.b16 %v116
    %v326 = vunpack.c.h.b16 %v116
    %v327 = vunpack.c.l.b16 %v117
    %v328 = vunpack.c.h.b16 %v117
    %v329 = vunpack.c.l.b16 %v118
    %v330 = vunpack.c.h.b16 %v118
    %v331 = vunpack.c.l.b16 %v119
    %v332 = vunpack.c.h.b16 %v119
    %v333 = vunpack.c.l.b16 %v120
    %v334 = vunpack.c.h.b16 %v120
    %v335 = vunpack.c.l.b16 %v121
    %v336 = vunpack.c.h.b16 %v121
    %v337 = vunpack.c.l.b16 %v122
    %v338 = vunpack.c.h.b16 %v122
    %v339 = vunpack.c.l.b16 %v123
    %v340 = vunpack.c.h.b16 %v123
    %v341 = vunpack.c.l.b16 %v124
    %v342 = vunpack.c.h.b16 %v124
    %v343 = vunpack.c.l.b16 %v125
    %v344 = vunpack.c.h.b16 %v125
    %v345 = vunpack.c.l.b16 %v126
    %v346 = vunpack.c.h.b16 %v126
    %v347 = vunpack.c.l.b16 %v127
    %v348 = vunpack.c.h.b16 %v127
    %v349 = vunpack.c.l.b16 %v128
    %v350 = vunpack.c.h.b16 %v128
    %v351 = vunpack.c.l.b16 %v129
    %v352 = vunpack.c.h.b16 %v129
    %v353 = vunpack.c.l.b16 %v130
    %v354 = vunpack.c.h.b16 %v130
    %v355 = vunpack.c.l.b16 %v131
    %v356 = vunpack.c.h.b16 %v131
    %v357 = vunpack.c.l.b16 %v132
    %v358 = vunpack.c.h.b16 %v132
    %v359 = vunpack.c.l.b16 %v133
    %v360 = vunpack.c.h.b16 %v133
    %v361 = vunpack.c.l.b16 %v134
    %v362 = vunpack.c.h.b16 %v134
    %v363 = vunpack.c.l.b16 %v135
    %v364 = vunpack.c.h.b16 %v135
    %v365 = vunpack.c.l.b16 %v136
    %v366 = vunpack.c.h.b16 %v136
    %v367 = vunpack.c.l.b16 %v137
    %v368 = vunpack.c.h.b16 %v137
    %v369 = vunpack.c.l.b16 %v138
    %v370 = vunpack.c.h.b16 %v138
    %v371 = vunpack.c.l.b16 %v139
    %v372 = vunpack.c.h.b16 %v139
    %v373 = vunpack.c.l.b16 %v140
    %v374 = vunpack.c.h.b16 %v140
    %v375 = vunpack.c.l.b16 %v141
    %v376 = vunpack.c.h.b16 %v141
    %v377 = vunpack.c.l.b16 %v142
    %v378 = vunpack.c.h.b16 %v142
    %v379 = vunpack.c.l.b16 %v143
    %v380 = vunpack.c.h.b16 %v143
    %v381 = vunpack.c.l.b16 %v144
    %v382 = vunpack.c.h.b16 %v144
    %v383 = vunpack.c.l.b16 %v145
    %v384 = vunpack.c.h.b16 %v145
    %v385 = vunpack.c.l.b16 %v146
    %v386 = vunpack.c.h.b16 %v146
    %v387 = vunpack.c.l.b16 %v147
    %v388 = vunpack.c.h.b16 %v147
    %v389 = vunpack.c.l.b16 %v148
    %v390 = vunpack.c.h.b16 %v148
    %v391 = vunpack.c.l.b16 %v149
    %v392 = vunpack.c.h.b16 %v149
    %v393 = vunpack.c.l.b16 %v150
    %v394 = vunpack.c.h.b16 %v150
    %v395 = vunpack.c.l.b16 %v151
    %v396 = vunpack.c.h.b16 %v151
    %v397 = vunpack.c.l.b16 %v152
    %v398 = vunpack.c.h.b16 %v152
    %v399 = vunpack.c.l.b16 %v153
    %v400 = vunpack.c.h.b16 %v153
    %v401 = vunpack.c.l.b16 %v154
    %v402 = vunpack.c.h.b16 %v154
    %v403 = vunpack.c.l.b16 %v155
    %v404 = vunpack.c.h.b16 %v155
    %v405 = vunpack.c.l.b16 %v156
    %v406 = vunpack.c.h.b16 %v156
    %v407 = vunpack.c.l.b16 %v157
    %v408 = vunpack.c.h.b16 %v157
    %v409 = vunpack.c.l.b16 %v158
    %v410 = vunpack.c.h.b16 %v158
    %v411 = vunpack.c.l.b16 %v159
    %v412 = vunpack.c.h.b16 %v159
    %v413 = vunpack.c.l.b16 %v160
    %v414 = vunpack.c.h.b16 %v160
    %v415 = vunpack.c.l.b16 %v161
    %v416 = vunpack.c.h.b16 %v161
    %v417 = vunpack.c.l.b16 %v162
    %v418 = vunpack.c.h.b16 %v162
    %v419 = vunpack.c.l.b16 %v163
    %v420 = vunpack.c.h.b16 %v163
    %v421 = vunpack.c.l.b16 %v164
    %v422 = vunpack.c.h.b16 %v164
    %v423 = vunpack.c.l.b16 %v165
    %v424 = vunpack.c.h.b16 %v165
    %v425 = vunpack.c.l.b16 %v166
    %v426 = vunpack.c.h.b16 %v166
    %v427 = vunpack.c.l.b16 %v167
    %v428 = vunpack.c.h.b16 %v167
    %v429 = vunpack.c.l.b16 %v168
    %v430 = vunpack.c.h.b16 %v168
    %v431 = vunpack.c.l.b16 %v169
    %v432 = vunpack.c.h.b16 %v169
    %v433 = vunpack.c.l.b16 %v170
    %v434 = vunpack.c.h.b16 %v170
    %v435 = vunpack.c.l.b16 %v171
    %v436 = vunpack.c.h.b16 %v171
    %v437 = vunpack.c.l.b16 %v172
    %v438 = vunpack.c.h.b16 %v172
    %v439 = vunpack.c.l.b16 %v173
    %v440 = vunpack.c.h.b16 %v173
    %v441 = vunpack.c.l.b16 %v174
    %v442 = vunpack.c.h.b16 %v174
    %v443 = vunpack.c.l.b16 %v175
    %v444 = vunpack.c.h.b16 %v175
    %v445 = vunpack.c.l.b16 %v176
    %v446 = vunpack.c.h.b16 %v176
    %v447 = vunpack.c.l.b16 %v177
    %v448 = vunpack.c.h.b16 %v177
    %v449 = vunpack.c.l.b16 %v178
    %v450 = vunpack.c.h.b16 %v178
    %v451 = vunpack.c.l.b16 %v179
    %v452 = vunpack.c.h.b16 %v179
    %v453 = vunpack.c.l.b16 %v180
    %v454 = vunpack.c.h.b16 %v180
    %v455 = vunpack.c.l.b16 %v181
    %v456 = vunpack.c.h.b16 %v181
    %v457 = vunpack.c.l.b16 %v182
    %v458 = vunpack.c.h.b16 %v182
    %v459 = vunpack.c.l.b16 %v183
    %v460 = vunpack.c.h.b16 %v183
    %v461 = vunpack.c.l.b16 %v184
    %v462 = vunpack.c.h.b16 %v184
    %v463 = vunpack.c.l.b16 %v185
    %v464 = vunpack.c.h.b16 %v185
    %v465 = vunpack.c.l.b16 %v186
    %v466 = vunpack.c.h.b16 %v186
    %v467 = vunpack.c.l.b16 %v187
    %v468 = vunpack.c.h.b16 %v187
    %v469 = vunpack.c.l.b16 %v188
    %v470 = vunpack.c.h.b16 %v188
    %v471 = vunpack.c.l.b16 %v189
    %v472 = vunpack.c.h.b16 %v189
    %v473 = vunpack.c.l.b16 %v190
    %v474 = vunpack.c.h.b16 %v190
    %v475 = vunpack.c.l.b16 %v191
    %v476 = vunpack.c.h.b16 %v191
    %v477 = vunpack.c.l.b16 %v192
    %v478 = vunpack.c.h.b16 %v192
    %v479 = vunpack.c.l.b16 %v193
    %v480 = vunpack.c.h.b16 %v193
    %v481 = vunpack.c.l.b16 %v194
    %v482 = vunpack.c.h.b16 %v194
    %v483 = vunpack.c.l.b16 %v195
    %v484 = vunpack.c.h.b16 %v195
    %v485 = vunpack.c.l.b16 %v196
    %v486 = vunpack.c.h.b16 %v196
    %v487 = vunpack.c.l.b16 %v197
    %v488 = vunpack.c.h.b16 %v197
    %v489 = vunpack.c.l.b16 %v198
    %v490 = vunpack.c.h.b16 %v198
    %v491 = vunpack.c.l.b16 %v199
    %v492 = vunpack.c.h.b16 %v199
    %v493 = vunpack.c.l.b16 %v200
    %v494 = vunpack.c.h.b16 %v200
    %v495 = vunpack.c.l.b16 %v201
    %v496 = vunpack.c.h.b16 %v201
    %v497 = vunpack.c.l.b16 %v202
    %v498 = vunpack.c.h.b16 %v202
    %v499 = vpack.c.b16 %v309, %v307
    %v500 = vpack.c.b16 %v310, %v308
    %v501 = vpack.c.b16 %v313, %v311
    %v502 = vpack.c.b16 %v314, %v312
    %v503 = vpack.c.b16 %v317, %v315
    %v504 = vpack.c.b16 %v318, %v316
    %v505 = vpack.c.b16 %v321, %v319
    %v506 = vpack.c.b16 %v322, %v320
    %v507 = vpack.c.b16 %v325, %v323
    %v508 = vpack.c.b16 %v326, %v324
    %v509 = vpack.c.b16 %v329, %v327
    %v510 = vpack.c.b16 %v330, %v328
    %v511 = vpack.c.b16 %v333, %v331
    %v512 = vpack.c.b16 %v334, %v332
    %v513 = vpack.c.b16 %v337, %v335
    %v514 = vpack.c.b16 %v338, %v336
    %v515 = vpack.c.b16 %v341, %v339
    %v516 = vpack.c.b16 %v342, %v340
    %v517 = vpack.c.b16 %v345, %v343
    %v518 = vpack.c.b16 %v346, %v344
    %v519 = vpack.c.b16 %v349, %v347
    %v520 = vpack.c.b16 %v350, %v348
    %v521 = vpack.c.b16 %v353, %v351
    %v522 = vpack.c.b16 %v354, %v352
    %v523 = vpack.c.b16 %v357, %v355
    %v524 = vpack.c.b16 %v358, %v356
    %v525 = vpack.c.b16 %v361, %v359
    %v526 = vpack.c.b16 %v362, %v360
    %v527 = vpack.c.b16 %v365, %v363
    %v528 = vpack.c.b16 %v366, %v364
    %v529 = vpack.c.b16 %v369, %v367
    %v530 = vpack.c.b16 %v370, %v368
    %v531 = vpack.c.b16 %v373, %v371
    %v532 = vpack.c.b16 %v374, %v372
    %v533 = vpack.c.b16 %v377, %v375
    %v534 = vpack.c.b16 %v378, %v376
    %v535 = vpack.c.b16 %v381, %v379
    %v536 = vpack.c.b16 %v382, %v380
    %v537 = vpack.c.b16 %v385, %v383
    %v538 = vpack.c.b16 %v386, %v384
    %v539 = vpack.c.b16 %v389, %v387
    %v540 = vpack.c.b16 %v390, %v388
    %v541 = vpack.c.b16 %v393, %v391
    %v542 = vpack.c.b16 %v394, %v392
    %v543 = vpack.c.b16 %v397, %v395
    %v544 = vpack.c.b16 %v398, %v396
    %v545 = vpack.c.b16 %v401, %v399
    %v546 = vpack.c.b16 %v402, %v400
    %v547 = vpack.c.b16 %v405, %v403
    %v548 = vpack.c.b16 %v406, %v404
    %v549 = vpack.c.b16 %v409, %v407
    %v550 = vpack.c.b16 %v410, %v408
    %v551 = vpack.c.b16 %v413, %v411
    %v552 = vpack.c.b16 %v414, %v412
    %v553 = vpack.c.b16 %v417, %v415
    %v554 = vpack.c.b16 %v418, %v416
    %v555 = vpack.c.b16 %v421, %v419
    %v556 = vpack.c.b16 %v422, %v420
    %v557 = vpack.c.b16 %v425, %v423
    %v558 = vpack.c.b16 %v426, %v424
    %v559 = vpack.c.b16 %v429, %v427
    %v560 = vpack.c.b16 %v430, %v428
    %v561 = vpack.c.b16 %v433, %v431
    %v562 = vpack.c.b16 %v434, %v432
    %v563 = vpack.c.b16 %v437, %v435
    %v564 = vpack.c.b16 %v438, %v436
    %v565 = vpack.c.b16 %v441, %v439
    %v566 = vpack.c.b16 %v442, %v440
    %v567 = vpack.c.b16 %v445, %v443
    %v568 = vpack.c.b16 %v446, %v444
    %v569 = vpack.c.b16 %v449, %v447
    %v570 = vpack.c.b16 %v450, %v448
    %v571 = vpack.c.b16 %v453, %v451
    %v572 = vpack.c.b16 %v454, %v452
    %v573 = vpack.c.b16 %v457, %v455
    %v574 = vpack.c.b16 %v458, %v456
    %v575 = vpack.c.b16 %v461, %v459
    %v576 = vpack.c.b16 %v462, %v460
    %v577 = vpack.c.b16 %v465, %v463
    %v578 = vpack.c.b16 %v466, %v464
    %v579 = vpack.c.b16 %v469, %v467
    %v580 = vpack.c.b16 %v470, %v468
    %v581 = vpack.c.b16 %v473, %v471
    %v582 = vpack.c.b16 %v474, %v472
    %v583 = vpack.c.b16 %v477, %v475
    %v584 = vpack.c.b16 %v478, %v476
    %v585 = vpack.c.b16 %v481, %v479
    %v586 = vpack.c.b16 %v482, %v480
    %v587 = vpack.c.b16 %v485, %v483
    %v588 = vpack.c.b16 %v486, %v484
    %v589 = vpack.c.b16 %v489, %v487
    %v590 = vpack.c.b16 %v490, %v488
    %v591 = vpack.c.b16 %v493, %v491
    %v592 = vpack.c.b16 %v494, %v492
    %v593 = vpack.c.b16 %v497, %v495
    %v594 = vpack.c.b16 %v498, %v496
    %691 = vmatprep.subr.bf16.mxu0 %v500
    %692 = vmatpush1.bf16.msra.mxu0 %v499
    %693 = vmatprep.subr.bf16.mxu0 %v502
    %694 = vmatpush1.bf16.msra.mxu0 %v501
    %695 = vmatprep.subr.bf16.mxu0 %v504
    %696 = vmatpush1.bf16.msra.mxu0 %v503
    %697 = vmatprep.subr.bf16.mxu0 %v506
    %698 = vmatpush1.bf16.msra.mxu0 %v505
    %699 = vmatprep.subr.bf16.mxu0 %v508
    %700 = vmatpush1.bf16.msra.mxu0 %v507
    %701 = vmatprep.subr.bf16.mxu0 %v510
    %702 = vmatpush1.bf16.msra.mxu0 %v509
    %703 = vmatprep.subr.bf16.mxu0 %v512
    %704 = vmatpush1.bf16.msra.mxu0 %v511
    %705 = vmatprep.subr.bf16.mxu0 %v514
    %706 = vmatpush1.bf16.msra.mxu0 %v513
    %707 = vmatprep.subr.bf16.mxu0 %v516
    %708 = vmatpush1.bf16.msra.mxu0 %v515
    %709 = vmatprep.subr.bf16.mxu0 %v518
    %710 = vmatpush1.bf16.msra.mxu0 %v517
    %711 = vmatprep.subr.bf16.mxu0 %v520
    %712 = vmatpush1.bf16.msra.mxu0 %v519
    %713 = vmatprep.subr.bf16.mxu0 %v522
    %714 = vmatpush1.bf16.msra.mxu0 %v521
    %715 = vmatprep.subr.bf16.mxu0 %v524
    %716 = vmatpush1.bf16.msra.mxu0 %v523
    %717 = vmatprep.subr.bf16.mxu0 %v526
    %718 = vmatpush1.bf16.msra.mxu0 %v525
    %719 = vmatprep.subr.bf16.mxu0 %v528
    %720 = vmatpush1.bf16.msra.mxu0 %v527
    %721 = vmatprep.subr.bf16.mxu0 %v530
    %722 = vmatpush1.bf16.msra.mxu0 %v529
    %723 = vmatprep.mubr.bf16.mxu0 %v100
    %724 = vmatmul.mubr.bf16.gmra.mrb[0].mxu0 %v99
    %v725 = vpop.f32.mrb[0].mxu0
    %v726 = vadd.f32 %v206, %v725
    %v727 = vpop.f32.mrb[0].mxu0
    %v728 = vadd.f32 %v210, %v727
    %v729 = vpop.f32.mrb[0].mxu0
    %v730 = vadd.f32 %v206, %v729
    %v731 = vpop.f32.mrb[0].mxu0
    %v732 = vadd.f32 %v210, %v731
    %733 = vdwg.mxu0
    %734 = vmatprep.subr.bf16.mxu0 %v532
    %735 = vmatpush1.bf16.msra.mxu0 %v531
    %736 = vmatprep.subr.bf16.mxu0 %v534
    %737 = vmatpush1.bf16.msra.mxu0 %v533
    %738 = vmatprep.subr.bf16.mxu0 %v536
    %739 = vmatpush1.bf16.msra.mxu0 %v535
    %740 = vmatprep.subr.bf16.mxu0 %v538
    %741 = vmatpush1.bf16.msra.mxu0 %v537
    %742 = vmatprep.subr.bf16.mxu0 %v540
    %743 = vmatpush1.bf16.msra.mxu0 %v539
    %744 = vmatprep.subr.bf16.mxu0 %v542
    %745 = vmatpush1.bf16.msra.mxu0 %v541
    %746 = vmatprep.subr.bf16.mxu0 %v544
    %747 = vmatpush1.bf16.msra.mxu0 %v543
    %748 = vmatprep.subr.bf16.mxu0 %v546
    %749 = vmatpush1.bf16.msra.mxu0 %v545
    %750 = vmatprep.subr.bf16.mxu0 %v548
    %751 = vmatpush1.bf16.msra.mxu0 %v547
    %752 = vmatprep.subr.bf16.mxu0 %v550
    %753 = vmatpush1.bf16.msra.mxu0 %v549
    %754 = vmatprep.subr.bf16.mxu0 %v552
    %755 = vmatpush1.bf16.msra.mxu0 %v551
    %756 = vmatprep.subr.bf16.mxu0 %v554
    %757 = vmatpush1.bf16.msra.mxu0 %v553
    %758 = vmatprep.subr.bf16.mxu0 %v556
    %759 = vmatpush1.bf16.msra.mxu0 %v555
    %760 = vmatprep.subr.bf16.mxu0 %v558
    %761 = vmatpush1.bf16.msra.mxu0 %v557
    %762 = vmatprep.subr.bf16.mxu0 %v560
    %763 = vmatpush1.bf16.msra.mxu0 %v559
    %764 = vmatprep.subr.bf16.mxu0 %v562
    %765 = vmatpush1.bf16.msra.mxu0 %v561
    %766 = vmatprep.mubr.bf16.mxu0 %v102
    %767 = vmatmul.mubr.bf16.gmra.mrb[0].mxu0 %v101
    %v768 = vpop.f32.mrb[0].mxu0
    %v769 = vadd.f32 %v726, %v768
    %v770 = vpop.f32.mrb[0].mxu0
    %v771 = vadd.f32 %v728, %v770
    %v772 = vpop.f32.mrb[0].mxu0
    %v773 = vadd.f32 %v730, %v772
    %v774 = vpop.f32.mrb[0].mxu0
    %v775 = vadd.f32 %v732, %v774
    %776 = vdwg.mxu0
    %777 = vmatprep.subr.bf16.mxu0 %v564
    %778 = vmatpush1.bf16.msra.mxu0 %v563
    %779 = vmatprep.subr.bf16.mxu0 %v566
    %780 = vmatpush1.bf16.msra.mxu0 %v565
    %781 = vmatprep.subr.bf16.mxu0 %v568
    %782 = vmatpush1.bf16.msra.mxu0 %v567
    %783 = vmatprep.subr.bf16.mxu0 %v570
    %784 = vmatpush1.bf16.msra.mxu0 %v569
    %785 = vmatprep.subr.bf16.mxu0 %v572
    %786 = vmatpush1.bf16.msra.mxu0 %v571
    %787 = vmatprep.subr.bf16.mxu0 %v574
    %788 = vmatpush1.bf16.msra.mxu0 %v573
    %789 = vmatprep.subr.bf16.mxu0 %v576
    %790 = vmatpush1.bf16.msra.mxu0 %v575
    %791 = vmatprep.subr.bf16.mxu0 %v578
    %792 = vmatpush1.bf16.msra.mxu0 %v577
    %793 = vmatprep.subr.bf16.mxu0 %v580
    %794 = vmatpush1.bf16.msra.mxu0 %v579
    %795 = vmatprep.subr.bf16.mxu0 %v582
    %796 = vmatpush1.bf16.msra.mxu0 %v581
    %797 = vmatprep.subr.bf16.mxu0 %v584
    %798 = vmatpush1.bf16.msra.mxu0 %v583
    %799 = vmatprep.subr.bf16.mxu0 %v586
    %800 = vmatpush1.bf16.msra.mxu0 %v585
    %801 = vmatprep.subr.bf16.mxu0 %v588
    %802 = vmatpush1.bf16.msra.mxu0 %v587
    %803 = vmatprep.subr.bf16.mxu0 %v590
    %804 = vmatpush1.bf16.msra.mxu0 %v589
    %805 = vmatprep.subr.bf16.mxu0 %v592
    %806 = vmatpush1.bf16.msra.mxu0 %v591
    %807 = vmatprep.subr.bf16.mxu0 %v594
    %808 = vmatpush1.bf16.msra.mxu0 %v593
    %809 = vmatprep.mubr.bf16.mxu0 %v104
    %810 = vmatmul.mubr.bf16.gmra.mrb[0].mxu0 %v103
    %v811 = vpop.f32.mrb[0].mxu0
    %v812 = vadd.f32 %v769, %v811
    %v813 = vpop.f32.mrb[0].mxu0
    %v814 = vadd.f32 %v771, %v813
    %v815 = vpop.f32.mrb[0].mxu0
    %v816 = vadd.f32 %v773, %v815
    %v817 = vpop.f32.mrb[0].mxu0
    %v818 = vadd.f32 %v775, %v817
    %819 = vdwg.mxu0
    %v820 = vadd.f32 %v812, %v816
    %v821 = vrot.slane %v820, 4
    %v822 = vadd.f32 %v820, %v821
    %v823 = vrot.slane %v822, 2
    %v824 = vadd.f32 %v822, %v823
    %v825 = vrot.slane %v824, 1
    %v826 = vadd.f32 %v824, %v825
    %v827 = vadd.f32 %v814, %v818
    %v828 = vrot.slane %v827, 4
    %v829 = vadd.f32 %v827, %v828
    %v830 = vrot.slane %v829, 2
    %v831 = vadd.f32 %v829, %v830
    %v832 = vrot.slane %v831, 1
    %v833 = vadd.f32 %v831, %v832
    %v834 = vrcp.pop 16.0
    %v835 = vmul.f32 %v826, %v834
    %v836 = vmul.f32 %v833, %v834
    %v837 = vmul.f32 %v812, %v812
    %v838 = vmul.f32 %v814, %v814
    %v839 = vmul.f32 %v816, %v816
    %v840 = vmul.f32 %v818, %v818
    %v841 = vadd.f32 %v837, %v839
    %v842 = vrot.slane %v841, 4
    %v843 = vadd.f32 %v841, %v842
    %v844 = vrot.slane %v843, 2
    %v845 = vadd.f32 %v843, %v844
    %v846 = vrot.slane %v845, 1
    %v847 = vadd.f32 %v845, %v846
    %v848 = vadd.f32 %v838, %v840
    %v849 = vrot.slane %v848, 4
    %v850 = vadd.f32 %v848, %v849
    %v851 = vrot.slane %v850, 2
    %v852 = vadd.f32 %v850, %v851
    %v853 = vrot.slane %v852, 1
    %v854 = vadd.f32 %v852, %v853
    %v855 = vmul.f32 %v847, %v834
    %v856 = vmul.f32 %v854, %v834
    %v857 = vmul.f32 %v835, %v835
    %v858 = vmul.f32 %v836, %v836
    %v859 = vsub.f32 %v855, %v857
    %v860 = vsub.f32 %v856, %v858
    %v861 = vmax.f32 %v859, 0.0
    %v862 = vmax.f32 %v860, 0.0
    %v863 = vsub.f32 %v812, %v835
    %v864 = vsub.f32 %v814, %v836
    %v865 = vsub.f32 %v816, %v835
    %v866 = vsub.f32 %v818, %v836
    %v867 = vadd.f32 %v861, 1e-05
    %v868 = vadd.f32 %v862, 1e-05
    %v869 = vrsqrt.pop %v867
    %v870 = vrsqrt.pop %v868
    %v871 = vmul.f32 %v863, %v869
    %v872 = vmul.f32 %v864, %v870
    %v873 = vmul.f32 %v865, %v869
    %v874 = vmul.f32 %v866, %v870
    %v875 = vlaneseq
    %v876 = vshrl.u32 %v875, 7
    %v877 = vsub.s32 1, %v876
    %v878 = vrot.slane %v105, %v877
    %v879 = vlaneseq
    %v880 = vshrl.u32 %v879, 7
    %v881 = vsub.s32 1, %v880
    %v882 = vrot.slane %v106, %v881
    %v883 = vmul.f32 %v871, %v878
    %v884 = vmul.f32 %v872, %v882
    %v885 = vmul.f32 %v873, %v878
    %v886 = vmul.f32 %v874, %v882
    %v887 = vlaneseq
    %v888 = vshrl.u32 %v887, 7
    %v889 = vsub.s32 2, %v888
    %v890 = vrot.slane %v105, %v889
    %v891 = vlaneseq
    %v892 = vshrl.u32 %v891, 7
    %v893 = vsub.s32 2, %v892
    %v894 = vrot.slane %v106, %v893
    %v895 = vadd.f32 %v883, %v890
    %v896 = vadd.f32 %v884, %v894
    %v897 = vadd.f32 %v885, %v890
    %v898 = vadd.f32 %v886, %v894
    %v899 = vmax.f32 %v895, 0.0
    %v900 = vmax.f32 %v896, 0.0
    %v901 = vmax.f32 %v897, 0.0
    %v902 = vmax.f32 %v898, 0.0
    %v903 = vpack.c.bf16 %v901, %v899
    %v904 = vpack.c.bf16 %v902, %v900
    %v905 = vld [vmem:[#allocation6] sm:$0xf]
    %v906 = vld [vmem:[#allocation6 + $0x4] sm:$0xf]
    %v907 = vld [vmem:[#allocation6 + $0x8] sm:$0xf]
    %v908 = vld [vmem:[#allocation6 + $0xc] sm:$0xf]
    %v909 = vld [vmem:[#allocation6 + $0x10] sm:$0xf]
    %v910 = vld [vmem:[#allocation6 + $0x14] sm:$0xf]
    %v911 = vld [vmem:[#allocation6 + $0x18] sm:$0xf]
    %v912 = vld [vmem:[#allocation6 + $0x1c] sm:$0xf]
    %v913 = vld [vmem:[#allocation6 + $0x20] sm:$0xf]
    %v914 = vld [vmem:[#allocation6 + $0x24] sm:$0xf]
    %v915 = vld [vmem:[#allocation6 + $0x28] sm:$0xf]
    %v916 = vld [vmem:[#allocation6 + $0x2c] sm:$0xf]
    %v917 = vld [vmem:[#allocation6 + $0x30] sm:$0xf]
    %v918 = vld [vmem:[#allocation6 + $0x34] sm:$0xf]
    %v919 = vld [vmem:[#allocation6 + $0x38] sm:$0xf]
    %v920 = vld [vmem:[#allocation6 + $0x3c] sm:$0xf]
    %v921 = vld [vmem:[#allocation6 + $0x40] sm:$0xf]
    %v922 = vld [vmem:[#allocation6 + $0x44] sm:$0xf]
    %v923 = vld [vmem:[#allocation6 + $0x48] sm:$0xf]
    %v924 = vld [vmem:[#allocation6 + $0x4c] sm:$0xf]
    %v925 = vld [vmem:[#allocation6 + $0x50] sm:$0xf]
    %v926 = vld [vmem:[#allocation6 + $0x54] sm:$0xf]
    %v927 = vld [vmem:[#allocation6 + $0x58] sm:$0xf]
    %v928 = vld [vmem:[#allocation6 + $0x5c] sm:$0xf]
    %v929 = vld [vmem:[#allocation6 + $0x60] sm:$0xf]
    %v930 = vld [vmem:[#allocation6 + $0x64] sm:$0xf]
    %v931 = vld [vmem:[#allocation6 + $0x68] sm:$0xf]
    %v932 = vld [vmem:[#allocation6 + $0x6c] sm:$0xf]
    %v933 = vld [vmem:[#allocation6 + $0x70] sm:$0xf]
    %v934 = vld [vmem:[#allocation6 + $0x74] sm:$0xf]
    %v935 = vld [vmem:[#allocation6 + $0x78] sm:$0xf]
    %v936 = vld [vmem:[#allocation6 + $0x7c] sm:$0xf]
    %v937 = vlaneseq
    %v938 = vshrl.u32 %v937, 7
    %v939 = vsub.s32 3, %v938
    %v940 = vrot.slane %v105, %v939
    %v973 = vunpack.c.l.b16 %v905
    %v974 = vunpack.c.l.b16 %v906
    %v975 = vunpack.c.l.b16 %v907
    %v976 = vunpack.c.l.b16 %v908
    %v977 = vunpack.c.l.b16 %v909
    %v978 = vunpack.c.l.b16 %v910
    %v979 = vunpack.c.l.b16 %v911
    %v980 = vunpack.c.l.b16 %v912
    %v981 = vunpack.c.l.b16 %v913
    %v982 = vunpack.c.l.b16 %v914
    %v983 = vunpack.c.l.b16 %v915
    %v984 = vunpack.c.l.b16 %v916
    %v985 = vunpack.c.l.b16 %v917
    %v986 = vunpack.c.l.b16 %v918
    %v987 = vunpack.c.l.b16 %v919
    %v988 = vunpack.c.l.b16 %v920
    %v989 = vunpack.c.l.b16 %v921
    %v990 = vunpack.c.l.b16 %v922
    %v991 = vunpack.c.l.b16 %v923
    %v992 = vunpack.c.l.b16 %v924
    %v993 = vunpack.c.l.b16 %v925
    %v994 = vunpack.c.l.b16 %v926
    %v995 = vunpack.c.l.b16 %v927
    %v996 = vunpack.c.l.b16 %v928
    %v997 = vunpack.c.l.b16 %v929
    %v998 = vunpack.c.l.b16 %v930
    %v999 = vunpack.c.l.b16 %v931
    %v1000 = vunpack.c.l.b16 %v932
    %v1001 = vunpack.c.l.b16 %v933
    %v1002 = vunpack.c.l.b16 %v934
    %v1003 = vunpack.c.l.b16 %v935
    %v1004 = vunpack.c.l.b16 %v936
    %v1005 = vpack.c.b16 %v974, %v973
    %v1006 = vpack.c.b16 %v976, %v975
    %v1007 = vpack.c.b16 %v978, %v977
    %v1008 = vpack.c.b16 %v980, %v979
    %v1009 = vpack.c.b16 %v982, %v981
    %v1010 = vpack.c.b16 %v984, %v983
    %v1011 = vpack.c.b16 %v986, %v985
    %v1012 = vpack.c.b16 %v988, %v987
    %v1013 = vpack.c.b16 %v990, %v989
    %v1014 = vpack.c.b16 %v992, %v991
    %v1015 = vpack.c.b16 %v994, %v993
    %v1016 = vpack.c.b16 %v996, %v995
    %v1017 = vpack.c.b16 %v998, %v997
    %v1018 = vpack.c.b16 %v1000, %v999
    %v1019 = vpack.c.b16 %v1002, %v1001
    %v1020 = vpack.c.b16 %v1004, %v1003
    %1037 = vmatprep.subr.bf16.mxu0 0
    %1038 = vmatpush1.bf16.msra.mxu0 %v1005
    %1039 = vmatprep.subr.bf16.mxu0 0
    %1040 = vmatpush1.bf16.msra.mxu0 %v1006
    %1041 = vmatprep.subr.bf16.mxu0 0
    %1042 = vmatpush1.bf16.msra.mxu0 %v1007
    %1043 = vmatprep.subr.bf16.mxu0 0
    %1044 = vmatpush1.bf16.msra.mxu0 %v1008
    %1045 = vmatprep.subr.bf16.mxu0 0
    %1046 = vmatpush1.bf16.msra.mxu0 %v1009
    %1047 = vmatprep.subr.bf16.mxu0 0
    %1048 = vmatpush1.bf16.msra.mxu0 %v1010
    %1049 = vmatprep.subr.bf16.mxu0 0
    %1050 = vmatpush1.bf16.msra.mxu0 %v1011
    %1051 = vmatprep.subr.bf16.mxu0 0
    %1052 = vmatpush1.bf16.msra.mxu0 %v1012
    %1053 = vmatprep.subr.bf16.mxu0 0
    %1054 = vmatpush1.bf16.msra.mxu0 %v1013
    %1055 = vmatprep.subr.bf16.mxu0 0
    %1056 = vmatpush1.bf16.msra.mxu0 %v1014
    %1057 = vmatprep.subr.bf16.mxu0 0
    %1058 = vmatpush1.bf16.msra.mxu0 %v1015
    %1059 = vmatprep.subr.bf16.mxu0 0
    %1060 = vmatpush1.bf16.msra.mxu0 %v1016
    %1061 = vmatprep.subr.bf16.mxu0 0
    %1062 = vmatpush1.bf16.msra.mxu0 %v1017
    %1063 = vmatprep.subr.bf16.mxu0 0
    %1064 = vmatpush1.bf16.msra.mxu0 %v1018
    %1065 = vmatprep.subr.bf16.mxu0 0
    %1066 = vmatpush1.bf16.msra.mxu0 %v1019
    %1067 = vmatprep.subr.bf16.mxu0 0
    %1068 = vmatpush1.bf16.msra.mxu0 %v1020
    %1069 = vmatprep.mubr.bf16.mxu0 %v904
    %1070 = vmatmul.mubr.bf16.gmra.mrb[0].mxu0 %v903
    %v1071 = vpop.f32.mrb[0].mxu0
    %v1072 = vadd.f32 %v940, %v1071
    %v1073 = vpop.f32.mrb[0].mxu0
    %v1074 = vpop.f32.mrb[0].mxu0
    %v1075 = vadd.f32 %v940, %v1074
    %v1076 = vpop.f32.mrb[0].mxu0
    %1077 = vdwg.mxu0
    %v1078 = vadd.f32 %v1072, %v1075
    %v1079 = vrot.slane %v1078, 4
    %v1080 = vadd.f32 %v1078, %v1079
    %v1081 = vrot.slane %v1080, 2
    %v1082 = vadd.f32 %v1080, %v1081
    %v1083 = vrot.slane %v1082, 1
    %v1084 = vadd.f32 %v1082, %v1083
    %v1085 = vmul.f32 %v1084, %v834
    %v1086 = vmul.f32 %v1072, %v1072
    %v1087 = vmul.f32 %v1075, %v1075
    %v1088 = vadd.f32 %v1086, %v1087
    %v1089 = vrot.slane %v1088, 4
    %v1090 = vadd.f32 %v1088, %v1089
    %v1091 = vrot.slane %v1090, 2
    %v1092 = vadd.f32 %v1090, %v1091
    %v1093 = vrot.slane %v1092, 1
    %v1094 = vadd.f32 %v1092, %v1093
    %v1095 = vmul.f32 %v1094, %v834
    %v1096 = vmul.f32 %v1085, %v1085
    %v1097 = vsub.f32 %v1095, %v1096
    %v1098 = vmax.f32 %v1097, 0.0
    %v1099 = vsub.f32 %v1072, %v1085
    %v1100 = vsub.f32 %v1075, %v1085
    %v1101 = vadd.f32 %v1098, 1e-05
    %v1102 = vrsqrt.pop %v1101
    %v1103 = vmul.f32 %v1099, %v1102
    %v1104 = vmul.f32 %v1100, %v1102
    %v1105 = vlaneseq
    %v1106 = vshrl.u32 %v1105, 7
    %v1107 = vsub.s32 4, %v1106
    %v1108 = vrot.slane %v105, %v1107
    %v1109 = vmul.f32 %v1103, %v1108
    %v1110 = vmul.f32 %v1104, %v1108
    %v1111 = vlaneseq
    %v1112 = vshrl.u32 %v1111, 7
    %v1113 = vsub.s32 5, %v1112
    %v1114 = vrot.slane %v105, %v1113
    %v1115 = vadd.f32 %v1109, %v1114
    %v1116 = vadd.f32 %v1110, %v1114
    %v1117 = vmax.f32 %v1115, 0.0
    %v1118 = vmax.f32 %v1116, 0.0
    %v1119 = vpack.c.bf16 %v1118, %v1117
    %v1120 = vld [vmem:[#allocation7] sm:$0xf]
    %v1121 = vld [vmem:[#allocation7 + $0x4] sm:$0xf]
    %v1122 = vld [vmem:[#allocation7 + $0x8] sm:$0xf]
    %v1123 = vld [vmem:[#allocation7 + $0xc] sm:$0xf]
    %v1124 = vld [vmem:[#allocation7 + $0x10] sm:$0xf]
    %v1125 = vld [vmem:[#allocation7 + $0x14] sm:$0xf]
    %v1126 = vld [vmem:[#allocation7 + $0x18] sm:$0xf]
    %v1127 = vld [vmem:[#allocation7 + $0x1c] sm:$0xf]
    %v1128 = vld [vmem:[#allocation7 + $0x20] sm:$0xf]
    %v1129 = vld [vmem:[#allocation7 + $0x24] sm:$0xf]
    %v1130 = vld [vmem:[#allocation7 + $0x28] sm:$0xf]
    %v1131 = vld [vmem:[#allocation7 + $0x2c] sm:$0xf]
    %v1132 = vld [vmem:[#allocation7 + $0x30] sm:$0xf]
    %v1133 = vld [vmem:[#allocation7 + $0x34] sm:$0xf]
    %v1134 = vld [vmem:[#allocation7 + $0x38] sm:$0xf]
    %v1135 = vld [vmem:[#allocation7 + $0x3c] sm:$0xf]
    %v1136 = vlaneseq
    %v1137 = vshrl.u32 %v1136, 7
    %v1138 = vsub.s32 6, %v1137
    %v1139 = vrot.slane %v105, %v1138
    %v1156 = vunpack.c.l.b16 %v1120
    %v1157 = vunpack.c.l.b16 %v1121
    %v1158 = vunpack.c.l.b16 %v1122
    %v1159 = vunpack.c.l.b16 %v1123
    %v1160 = vunpack.c.l.b16 %v1124
    %v1161 = vunpack.c.l.b16 %v1125
    %v1162 = vunpack.c.l.b16 %v1126
    %v1163 = vunpack.c.l.b16 %v1127
    %v1164 = vunpack.c.l.b16 %v1128
    %v1165 = vunpack.c.l.b16 %v1129
    %v1166 = vunpack.c.l.b16 %v1130
    %v1167 = vunpack.c.l.b16 %v1131
    %v1168 = vunpack.c.l.b16 %v1132
    %v1169 = vunpack.c.l.b16 %v1133
    %v1170 = vunpack.c.l.b16 %v1134
    %v1171 = vunpack.c.l.b16 %v1135
    %v1172 = vpack.c.b16 %v1157, %v1156
    %v1173 = vpack.c.b16 %v1159, %v1158
    %v1174 = vpack.c.b16 %v1161, %v1160
    %v1175 = vpack.c.b16 %v1163, %v1162
    %v1176 = vpack.c.b16 %v1165, %v1164
    %v1177 = vpack.c.b16 %v1167, %v1166
    %v1178 = vpack.c.b16 %v1169, %v1168
    %v1179 = vpack.c.b16 %v1171, %v1170
    %1188 = vmatprep.subr.bf16.mxu0 0
    %1189 = vmatpush1.bf16.msra.mxu0 %v1172
    %1190 = vmatprep.subr.bf16.mxu0 0
    %1191 = vmatpush1.bf16.msra.mxu0 %v1173
    %1192 = vmatprep.subr.bf16.mxu0 0
    %1193 = vmatpush1.bf16.msra.mxu0 %v1174
    %1194 = vmatprep.subr.bf16.mxu0 0
    %1195 = vmatpush1.bf16.msra.mxu0 %v1175
    %1196 = vmatprep.subr.bf16.mxu0 0
    %1197 = vmatpush1.bf16.msra.mxu0 %v1176
    %1198 = vmatprep.subr.bf16.mxu0 0
    %1199 = vmatpush1.bf16.msra.mxu0 %v1177
    %1200 = vmatprep.subr.bf16.mxu0 0
    %1201 = vmatpush1.bf16.msra.mxu0 %v1178
    %1202 = vmatprep.subr.bf16.mxu0 0
    %1203 = vmatpush1.bf16.msra.mxu0 %v1179
    %1204 = vmatprep.subr.bf16.mxu0 0
    %1205 = vmatpush1.bf16.msra.mxu0 0
    %1206 = vmatprep.subr.bf16.mxu0 0
    %1207 = vmatpush1.bf16.msra.mxu0 0
    %1208 = vmatprep.subr.bf16.mxu0 0
    %1209 = vmatpush1.bf16.msra.mxu0 0
    %1210 = vmatprep.subr.bf16.mxu0 0
    %1211 = vmatpush1.bf16.msra.mxu0 0
    %1212 = vmatprep.subr.bf16.mxu0 0
    %1213 = vmatpush1.bf16.msra.mxu0 0
    %1214 = vmatprep.subr.bf16.mxu0 0
    %1215 = vmatpush1.bf16.msra.mxu0 0
    %1216 = vmatprep.subr.bf16.mxu0 0
    %1217 = vmatpush1.bf16.msra.mxu0 0
    %1218 = vmatprep.subr.bf16.mxu0 0
    %1219 = vmatpush1.bf16.msra.mxu0 0
    %1220 = vmatprep.mubr.bf16.mxu0 0
    %1221 = vmatmul.mubr.bf16.gmra.mrb[0].mxu0 %v1119
    %v1222 = vpop.f32.mrb[0].mxu0
    %v1223 = vadd.f32 %v1139, %v1222
    %v1224 = vpop.f32.mrb[0].mxu0
    %v1225 = vpop.f32.mrb[0].mxu0
    %v1226 = vadd.f32 %v1139, %v1225
    %v1227 = vpop.f32.mrb[0].mxu0
    %1228 = vdwg.mxu0
    %1229 = vmax.xlane.f32.xlu0 %v1223
    %v1230 = vpop.xlane.xlu0 %1229
    %1231 = vmax.xlane.f32.xlu0 %v1226
    %v1232 = vpop.xlane.xlu0 %1231
    %v1233 = vsub.f32 %v1223, %v1230
    %v1234 = vsub.f32 %v1226, %v1232
    %v1235 = vmul.f32 %v1233, 1.442695
    %v1236 = vpow.pop %v1235
    %v1237 = vmul.f32 %v1234, 1.442695
    %v1238 = vpow.pop %v1237
    %1239 = vadd.xlane.f32.xlu0 %v1236
    %v1240 = vpop.xlane.xlu0 %1239
    %1241 = vadd.xlane.f32.xlu0 %v1238
    %v1242 = vpop.xlane.xlu0 %1241
    %v1243 = vlog2.pop %v1240
    %v1244 = vmul.f32 %v1243, 0.6931472
    %v1245 = vlog2.pop %v1242
    %v1246 = vmul.f32 %v1245, 0.6931472
    %v1247 = vsub.f32 %v1233, %v1244
    %v1248 = vsub.f32 %v1234, %v1246
    %vm1249 = vcmask 15360
    %1250 = vst.msk [vmem:[%s5] sm:$0xff] %vm1249, %v1247
    %1251 = vst.msk [vmem:[%s5 + $0x8] sm:$0xff] %vm1249, %v1248
    // Predicated region
    $region42: #{tpu_custom_call.1} parent=1 // pred_check
      _
    $region43: #{tpu_custom_call.1} parent=1 // pred_check_branch
      %1253 = sbr.rel (0) target = $region45
    $region44: #{tpu_custom_call.1} parent=1 // pred_region
      _
    $region45: #{tpu_custom_call.1} parent=1 // pred_fallthru
      _
    // Predicated region
    $region46: #{tpu_custom_call.1} parent=1 // pred_check
      _
    $region47: #{tpu_custom_call.1} parent=1 // pred_check_branch
      %1255 = sbr.rel (0) target = $region49
    $region48: #{tpu_custom_call.1} parent=1 // pred_region
      _
    $region49: #{tpu_custom_call.1} parent=1 // pred_fallthru
      _
    %1256 = vsyncpa [#allocation3], 1
    %1257 = vsyncpa [#allocation5], 1
    %1258 = vsyncpa [#allocation8], 1

</llo_original>
